<compile_context>
chip_gen: v7x
topology: tpu7x:2x2x1
jax: 0.10.0
libtpu: 0.0.40
codegen_flags: <defaults>
</compile_context>

<pallas_src>
import functools

import jax
import jax.numpy as jnp
from jax.experimental import pallas as pl
from jax.experimental.pallas import tpu as pltpu


def _double_loss_kernel(logits_ref, target_ref, recon_ref, x_ref, out_ref,
                        acc_ref, ce_ref, *, rows, tb, steps, batch, needs_mask):
    core = pl.program_id(0)
    k = pl.program_id(1)

    # ---- per-core init -------------------------------------------------------
    @pl.when(k == 0)
    def _():
        acc_ref[...] = jnp.zeros_like(acc_ref)
        ce_ref[0] = jnp.float32(0.0)

    # ---- CE on (core 0, step 0): hidden under the step-1 stream DMA ----------
    @pl.when(jnp.logical_and(core == 0, k == 0))
    def _():
        logits = logits_ref[...].astype(jnp.float32)               # (B, C)
        B, C = logits.shape
        m = jnp.max(logits, axis=-1, keepdims=True)
        lse = jnp.log(jnp.sum(jnp.exp(logits - m), axis=-1, keepdims=True)) + m
        tgt = target_ref[...]                                      # (B, 1) int32
        col = jax.lax.broadcasted_iota(jnp.int32, (B, C), 1)
        # TODO(synk): for vocab-sized C, tile the CE over C with an online logsumexp
        tgt_logit = jnp.sum(jnp.where(col == tgt, logits, 0.0),
                            axis=-1, keepdims=True)
        ce_ref[0] = jnp.sum(lse - tgt_logit) / jnp.float32(batch)

    # ---- MSE partial: pure VPU elementwise accumulate (no per-step reduce) ----
    d = recon_ref[...].astype(jnp.float32) - x_ref[...].astype(jnp.float32)
    dd = d * d
    if needs_mask:  # trace-time flag: ragged last block / phantom megacore block
        blk = core * steps + k
        gid = blk * tb + jax.lax.broadcasted_iota(jnp.int32, dd.shape, 0)
        dd = jnp.where(gid < rows, dd, 0.0)
    acc_ref[...] += dd

    # ---- finalize: one cross-lane reduce, full-block (1, 8, 128) store --------
    @pl.when(k == pl.num_programs(1) - 1)
    def _():
        sse = jnp.sum(acc_ref[...])
        sub = jax.lax.broadcasted_iota(jnp.int32, (1, 8, 128), 1)
        lane = jax.lax.broadcasted_iota(jnp.int32, (1, 8, 128), 2)
        out_ref[...] = (
            jnp.where(jnp.logical_and(sub == 0, lane == 0), ce_ref[0], 0.0)
            + jnp.where(jnp.logical_and(sub == 0, lane == 1), sse, 0.0))


def double_loss(logits, recon, x, target, lambd=0.5):
    """JAX/Pallas equivalent of DoubleLoss.forward((logits, recon), x, target)."""
    B, C = logits.shape
    target2d = target.astype(jnp.int32).reshape(B, 1)

    r1 = recon.reshape(-1)
    x1 = x.reshape(-1)
    n = r1.shape[0]
    assert x1.shape[0] == n, "recon and x must have the same number of elements"
    itemsize = r1.dtype.itemsize

    # ---- lane width: largest of {512,256,128} dividing n -> copy-free reshape --
    TD = None
    for cand in (512, 256, 128):
        if n >= cand and n % cand == 0:
            TD = cand
            break

    tail_sse = jnp.float32(0.0)
    if TD is None:
        TD = 128
        n_main = (n // TD) * TD
        if n_main == 0:
            # degenerate (<128-element) stream: pad up to one (8,128) tile
            pad = 8 * TD - n
            r1 = jnp.pad(r1, (0, pad))
            x1 = jnp.pad(x1, (0, pad))
            n_main = 8 * TD
        else:
            # <128-element ragged tail folded in on the wrapper side.
            # TODO(synk): the prefix slice may still materialize one copy; only
            # hit when n is not a multiple of 128 (rare for real tensors).
            tail_sse = jnp.sum((r1[n_main:].astype(jnp.float32)
                                - x1[n_main:].astype(jnp.float32)) ** 2)
            r1 = r1[:n_main]
            x1 = x1[:n_main]
    else:
        n_main = n

    rows = n_main // TD
    r2 = r1.reshape(rows, TD)
    x2 = x1.reshape(rows, TD)

    # ---- streamed tile: ~2 MiB per buffer, sublane-aligned --------------------
    target_tile_bytes = 2 * 1024 * 1024
    tb = max(8, (target_tile_bytes // (TD * itemsize)) // 8 * 8)
    if rows <= tb:
        tb = rows                              # single full-dim block
    nb = (rows + tb - 1) // tb                 # number of real row blocks
    num_cores = 2 if nb >= 2 else 1            # v7x: 2 TCs; v5e/v6e: outer loop
    steps = (nb + num_cores - 1) // num_cores  # blocks per core
    needs_mask = (rows % tb != 0) or (nb != num_cores * steps)
    nb_last = nb - 1

    def stream_map(i, k):
        # Clamp phantom blocks (odd nb, second core's tail) back in bounds;
        # their contribution is zeroed by the in-kernel row mask.
        return (jnp.minimum(i * steps + k, nb_last), 0)

    kernel = functools.partial(
        _double_loss_kernel, rows=rows, tb=tb, steps=steps, batch=B,
        needs_mask=needs_mask)

    cost = pl.CostEstimate(
        flops=(5 if needs_mask else 3) * n_main + 6 * B * C,
        transcendentals=B * C + B,
        bytes_accessed=(n_main * 2 * itemsize + B * C * logits.dtype.itemsize
                        + B * 4 + num_cores * 8 * 128 * 4),
    )

    partials = pl.pallas_call(
        kernel,
        out_shape=jax.ShapeDtypeStruct((num_cores, 8, 128), jnp.float32),
        grid_spec=pltpu.PrefetchScalarGridSpec(
            num_scalar_prefetch=0,
            grid=(num_cores, steps),
            in_specs=[
                pl.BlockSpec((B, C), lambda i, k: (0, 0)),   # logits, resident
                pl.BlockSpec((B, 1), lambda i, k: (0, 0)),   # target, resident
                pl.BlockSpec((tb, TD), stream_map),          # recon tiles (pipelined)
                pl.BlockSpec((tb, TD), stream_map),          # x tiles     (pipelined)
            ],
            out_specs=pl.BlockSpec((1, 8, 128), lambda i, k: (i, 0, 0)),
            scratch_shapes=[
                pltpu.VMEM((tb, TD), jnp.float32),           # per-element SSE accumulator
                pltpu.SMEM((1,), jnp.float32),               # CE stash (step 0 -> last)
            ],
        ),
        compiler_params=pltpu.CompilerParams(
            dimension_semantics=("parallel", "arbitrary"),
            vmem_limit_bytes=48 * 1024 * 1024,
        ),
        cost_estimate=cost,
    )(logits, target2d, r2, x2)

    ce = partials[0, 0, 0]
    sse = jnp.sum(partials[:, 0, 1]) + tail_sse
    mse = sse / jnp.float32(n)
    lam = jnp.float32(lambd)
    return lam * ce + (jnp.float32(1.0) - lam) * mse


def _reference(logits, recon, x, target, lambd=0.5):
    B = logits.shape[0]
    logp = jax.nn.log_softmax(logits.astype(jnp.float32), axis=-1)
    ce = -jnp.mean(jnp.take_along_axis(logp, target.reshape(B, 1), axis=-1))
    mse = jnp.mean((recon.reshape(B, -1).astype(jnp.float32)
                    - x.reshape(B, -1).astype(jnp.float32)) ** 2)
    return lambd * ce + (1.0 - lambd) * mse


if __name__ == "__main__":
    key = jax.random.PRNGKey(0)
    k1, k2, k3, k4 = jax.random.split(key, 4)

    # small shapes consistent with the module's forward
    B, C, H, W = 2, 4, 16, 16
    num_classes = C

    logits = jax.random.normal(k1, (B, num_classes), dtype=jnp.float32)   # input[0]
    recon = jax.random.normal(k2, (B, C, H, W), dtype=jnp.float32)        # input[1]
    x = jax.random.normal(k3, (B, C, H, W), dtype=jnp.float32)            # _input
    target = jax.random.randint(k4, (B,), 0, num_classes, dtype=jnp.int32)

    loss = jax.block_until_ready(double_loss(logits, recon, x, target, lambd=0.5))
    ref = _reference(logits, recon, x, target, lambd=0.5)
    assert jnp.allclose(loss, ref, rtol=1e-5, atol=1e-5), (loss, ref)

    # second check: non-128-aligned element count exercises the wrapper tail path
    recon2 = jax.random.normal(k2, (B, C, 10, 10), dtype=jnp.float32)
    x2 = jax.random.normal(k3, (B, C, 10, 10), dtype=jnp.float32)
    loss2 = jax.block_until_ready(double_loss(logits, recon2, x2, target, lambd=0.25))
    ref2 = _reference(logits, recon2, x2, target, lambd=0.25)
    assert jnp.allclose(loss2, ref2, rtol=1e-5, atol=1e-5), (loss2, ref2)

    # third check: multi-block stream exercises the masked partial block,
    # the clamped phantom block, and the 2-way partial-sum output path
    recon3 = jax.random.normal(k2, (B, C, 384, 384), dtype=jnp.float32)
    x3 = jax.random.normal(k3, (B, C, 384, 384), dtype=jnp.float32)
    loss3 = jax.block_until_ready(double_loss(logits, recon3, x3, target, lambd=0.5))
    ref3 = _reference(logits, recon3, x3, target, lambd=0.5)
    assert jnp.allclose(loss3, ref3, rtol=1e-5, atol=1e-5), (loss3, ref3)

    print("KERNEL_OK")
</pallas_src>

<mosaic_0001>
module attributes {stable_mosaic.version = 11 : i64} {
  func.func @_double_loss_kernel(%arg0: i32, %arg1: i32, %arg2: memref<2x4xf32, #tpu.memory_space<vmem>>, %arg3: memref<2x1xi32, #tpu.memory_space<vmem>>, %arg4: memref<4x512xf32, #tpu.memory_space<vmem>>, %arg5: memref<4x512xf32, #tpu.memory_space<vmem>>, %arg6: memref<1x8x128xf32, #tpu.memory_space<vmem>>, %arg7: memref<4x512xf32, #tpu.memory_space<vmem>>, %arg8: memref<1xf32, #tpu.memory_space<smem>>) attributes {dimension_semantics = [#tpu.dimension_semantics<parallel>, #tpu.dimension_semantics<arbitrary>], iteration_bounds = array<i64: 1, 1>, scalar_prefetch = 0 : i64, scratch_operands = 2 : i64, tpu.core_type = #tpu.core_type<tc>, window_params = [{pipeline_mode = #tpu.pipeline_mode<synchronous>, transform_indices = @transform_0, window_bounds = array<i64: 2, 4>}, {pipeline_mode = #tpu.pipeline_mode<synchronous>, transform_indices = @transform_1, window_bounds = array<i64: 2, 1>}, {transform_indices = @transform_2, window_bounds = array<i64: 4, 512>}, {transform_indices = @transform_3, window_bounds = array<i64: 4, 512>}, {transform_indices = @transform_4, window_bounds = array<i64: 1, 8, 128>}]} {
    %c0_i32 = arith.constant 0 : i32
    %0 = arith.cmpi eq, %arg1, %c0_i32 : i32
    %1 = arith.extui %0 : i1 to i32
    %c0_i32_0 = arith.constant 0 : i32
    %2 = arith.cmpi ne, %1, %c0_i32_0 : i32
    scf.if %2 {
      %cst = arith.constant 0.000000e+00 : f32
      %18 = vector.broadcast %cst : f32 to vector<4x512xf32>
      %c0_13 = arith.constant 0 : index
      %c0_14 = arith.constant 0 : index
      %19 = vector.load %arg7[%c0_13, %c0_14] : memref<4x512xf32, #tpu.memory_space<vmem>>, vector<4x512xf32>
      tpu.vector_store %arg7[%c0_13, %c0_14], %18 {strides = array<i32>} : memref<4x512xf32, #tpu.memory_space<vmem>>, vector<4x512xf32>,
      %cst_15 = arith.constant 0.000000e+00 : f32
      %c0_16 = arith.constant 0 : index
      %20 = memref.load %arg8[%c0_16] : memref<1xf32, #tpu.memory_space<smem>>
      memref.store %cst_15, %arg8[%c0_16] : memref<1xf32, #tpu.memory_space<smem>>
    } else {
    }
    %c0_i32_1 = arith.constant 0 : i32
    %3 = arith.cmpi eq, %arg0, %c0_i32_1 : i32
    %c0_i32_2 = arith.constant 0 : i32
    %4 = arith.cmpi eq, %arg1, %c0_i32_2 : i32
    %5 = arith.andi %3, %4 : i1
    %6 = arith.extui %5 : i1 to i32
    %c0_i32_3 = arith.constant 0 : i32
    %7 = arith.cmpi ne, %6, %c0_i32_3 : i32
    scf.if %7 {
      %c0_13 = arith.constant 0 : index
      %c0_14 = arith.constant 0 : index
      %18 = vector.load %arg2[%c0_13, %c0_14] : memref<2x4xf32, #tpu.memory_space<vmem>>, vector<2x4xf32>
      %cst = arith.constant dense<0xFF800000> : vector<2xf32>
      %19 = vector.multi_reduction <maximumf>, %18, %cst [1] : vector<2x4xf32> to vector<2xf32>
      %20 = vector.shape_cast %19 : vector<2xf32> to vector<2x1xf32>
      %21 = vector.broadcast %20 : vector<2x1xf32> to vector<2x4xf32>
      %22 = arith.subf %18, %21 : vector<2x4xf32>
      %23 = math.exp %22 : vector<2x4xf32>
      %cst_15 = arith.constant dense<0.000000e+00> : vector<2xf32>
      %24 = vector.multi_reduction <add>, %23, %cst_15 [1] : vector<2x4xf32> to vector<2xf32>
      %25 = vector.shape_cast %24 : vector<2xf32> to vector<2x1xf32>
      %26 = math.log %25 : vector<2x1xf32>
      %27 = arith.addf %26, %20 : vector<2x1xf32>
      %c0_16 = arith.constant 0 : index
      %c0_17 = arith.constant 0 : index
      %28 = vector.load %arg3[%c0_16, %c0_17] : memref<2x1xi32, #tpu.memory_space<vmem>>, vector<2x1xi32>
      %29 = tpu.iota {dimensions = array<i32: 1>} : vector<2x4xi32>
      %30 = vector.broadcast %28 : vector<2x1xi32> to vector<2x4xi32>
      %31 = arith.cmpi eq, %29, %30 : vector<2x4xi32>
      %cst_18 = arith.constant 0.000000e+00 : f32
      %32 = vector.broadcast %cst_18 : f32 to vector<2x4xf32>
      %33 = arith.select %31, %18, %32 : vector<2x4xi1>, vector<2x4xf32>
      %cst_19 = arith.constant dense<0.000000e+00> : vector<2xf32>
      %34 = vector.multi_reduction <add>, %33, %cst_19 [1] : vector<2x4xf32> to vector<2xf32>
      %35 = vector.shape_cast %34 : vector<2xf32> to vector<2x1xf32>
      %36 = arith.subf %27, %35 : vector<2x1xf32>
      %37 = vector.shape_cast %36 : vector<2x1xf32> to vector<1x2x1xf32>
      %cst_20 = arith.constant dense<0.000000e+00> : vector<1xf32>
      %38 = vector.multi_reduction <add>, %37, %cst_20 [1, 2] : vector<1x2x1xf32> to vector<1xf32>
      %39 = vector.shape_cast %38 : vector<1xf32> to vector<1x1x1xf32>
      %40 = vector.extract %39[0, 0, 0] : f32 from vector<1x1x1xf32>
      %cst_21 = arith.constant 2.000000e+00 : f32
      %41 = arith.divf %40, %cst_21 : f32
      %c0_22 = arith.constant 0 : index
      %42 = memref.load %arg8[%c0_22] : memref<1xf32, #tpu.memory_space<smem>>
      memref.store %41, %arg8[%c0_22] : memref<1xf32, #tpu.memory_space<smem>>
    } else {
    }
    %c0 = arith.constant 0 : index
    %c0_4 = arith.constant 0 : index
    %8 = vector.load %arg4[%c0, %c0_4] : memref<4x512xf32, #tpu.memory_space<vmem>>, vector<4x512xf32>
    %c0_5 = arith.constant 0 : index
    %c0_6 = arith.constant 0 : index
    %9 = vector.load %arg5[%c0_5, %c0_6] : memref<4x512xf32, #tpu.memory_space<vmem>>, vector<4x512xf32>
    %10 = arith.subf %8, %9 : vector<4x512xf32>
    %11 = arith.mulf %10, %10 : vector<4x512xf32>
    %c0_7 = arith.constant 0 : index
    %c0_8 = arith.constant 0 : index
    %12 = vector.load %arg7[%c0_7, %c0_8] : memref<4x512xf32, #tpu.memory_space<vmem>>, vector<4x512xf32>
    %13 = arith.addf %12, %11 : vector<4x512xf32>
    %c0_9 = arith.constant 0 : index
    %c0_10 = arith.constant 0 : index
    %14 = vector.load %arg7[%c0_9, %c0_10] : memref<4x512xf32, #tpu.memory_space<vmem>>, vector<4x512xf32>
    tpu.vector_store %arg7[%c0_9, %c0_10], %13 {strides = array<i32>} : memref<4x512xf32, #tpu.memory_space<vmem>>, vector<4x512xf32>,
    %c0_i32_11 = arith.constant 0 : i32
    %15 = arith.cmpi eq, %arg1, %c0_i32_11 : i32
    %16 = arith.extui %15 : i1 to i32
    %c0_i32_12 = arith.constant 0 : i32
    %17 = arith.cmpi ne, %16, %c0_i32_12 : i32
    scf.if %17 {
      %c0_13 = arith.constant 0 : index
      %c0_14 = arith.constant 0 : index
      %18 = vector.load %arg7[%c0_13, %c0_14] : memref<4x512xf32, #tpu.memory_space<vmem>>, vector<4x512xf32>
      %19 = vector.shape_cast %18 : vector<4x512xf32> to vector<1x4x512xf32>
      %cst = arith.constant dense<0.000000e+00> : vector<1xf32>
      %20 = vector.multi_reduction <add>, %19, %cst [1, 2] : vector<1x4x512xf32> to vector<1xf32>
      %21 = vector.shape_cast %20 : vector<1xf32> to vector<1x1x1xf32>
      %22 = vector.extract %21[0, 0, 0] : f32 from vector<1x1x1xf32>
      %23 = tpu.iota {dimensions = array<i32: 1>} : vector<1x8x128xi32>
      %24 = tpu.iota {dimensions = array<i32: 2>} : vector<1x8x128xi32>
      %c0_i32_15 = arith.constant 0 : i32
      %25 = vector.broadcast %c0_i32_15 : i32 to vector<1x8x128xi32>
      %26 = arith.cmpi eq, %23, %25 : vector<1x8x128xi32>
      %c0_i32_16 = arith.constant 0 : i32
      %27 = vector.broadcast %c0_i32_16 : i32 to vector<1x8x128xi32>
      %28 = arith.cmpi eq, %24, %27 : vector<1x8x128xi32>
      %29 = arith.andi %26, %28 : vector<1x8x128xi1>
      %c0_17 = arith.constant 0 : index
      %30 = memref.load %arg8[%c0_17] : memref<1xf32, #tpu.memory_space<smem>>
      %cst_18 = arith.constant 0.000000e+00 : f32
      %31 = vector.broadcast %30 : f32 to vector<1x8x128xf32>
      %32 = vector.broadcast %cst_18 : f32 to vector<1x8x128xf32>
      %33 = arith.select %29, %31, %32 : vector<1x8x128xi1>, vector<1x8x128xf32>
      %c0_i32_19 = arith.constant 0 : i32
      %34 = vector.broadcast %c0_i32_19 : i32 to vector<1x8x128xi32>
      %35 = arith.cmpi eq, %23, %34 : vector<1x8x128xi32>
      %c1_i32 = arith.constant 1 : i32
      %36 = vector.broadcast %c1_i32 : i32 to vector<1x8x128xi32>
      %37 = arith.cmpi eq, %24, %36 : vector<1x8x128xi32>
      %38 = arith.andi %35, %37 : vector<1x8x128xi1>
      %cst_20 = arith.constant 0.000000e+00 : f32
      %39 = vector.broadcast %22 : f32 to vector<1x8x128xf32>
      %40 = vector.broadcast %cst_20 : f32 to vector<1x8x128xf32>
      %41 = arith.select %38, %39, %40 : vector<1x8x128xi1>, vector<1x8x128xf32>
      %42 = arith.addf %33, %41 : vector<1x8x128xf32>
      %c0_21 = arith.constant 0 : index
      %c0_22 = arith.constant 0 : index
      %c0_23 = arith.constant 0 : index
      %43 = vector.load %arg6[%c0_21, %c0_22, %c0_23] : memref<1x8x128xf32, #tpu.memory_space<vmem>>, vector<1x8x128xf32>
      tpu.vector_store %arg6[%c0_21, %c0_22, %c0_23], %42 {strides = array<i32>} : memref<1x8x128xf32, #tpu.memory_space<vmem>>, vector<1x8x128xf32>,
    } else {
    }
    return
  }
  func.func @transform_0(%arg0: i32, %arg1: i32) -> (i32, i32) {
    %c0_i32 = arith.constant 0 : i32
    %c0_i32_0 = arith.constant 0 : i32
    %c0_i32_1 = arith.constant 0 : i32
    return %c0_i32, %c0_i32_0 : i32, i32
  }
  func.func @transform_1(%arg0: i32, %arg1: i32) -> (i32, i32) {
    %c0_i32 = arith.constant 0 : i32
    %c0_i32_0 = arith.constant 0 : i32
    %c0_i32_1 = arith.constant 0 : i32
    return %c0_i32, %c0_i32_0 : i32, i32
  }
  func.func @transform_2(%arg0: i32, %arg1: i32) -> (i32, i32) {
    %c1_i32 = arith.constant 1 : i32
    %0 = arith.muli %arg0, %c1_i32 : i32
    %1 = arith.addi %0, %arg1 : i32
    %c0_i32 = arith.constant 0 : i32
    %2 = arith.minsi %1, %c0_i32 : i32
    %c0_i32_0 = arith.constant 0 : i32
    %c0_i32_1 = arith.constant 0 : i32
    return %2, %c0_i32_0 : i32, i32
  }
  func.func @transform_3(%arg0: i32, %arg1: i32) -> (i32, i32) {
    %c1_i32 = arith.constant 1 : i32
    %0 = arith.muli %arg0, %c1_i32 : i32
    %1 = arith.addi %0, %arg1 : i32
    %c0_i32 = arith.constant 0 : i32
    %2 = arith.minsi %1, %c0_i32 : i32
    %c0_i32_0 = arith.constant 0 : i32
    %c0_i32_1 = arith.constant 0 : i32
    return %2, %c0_i32_0 : i32, i32
  }
  func.func @transform_4(%arg0: i32, %arg1: i32) -> (i32, i32, i32) {
    %c0_i32 = arith.constant 0 : i32
    %c0_i32_0 = arith.constant 0 : i32
    %c0_i32_1 = arith.constant 0 : i32
    return %arg0, %c0_i32, %c0_i32_0 : i32, i32, i32
  }
}

</mosaic_0001>

<llo_original>
// kernel: tpu_custom_call.1
$region0: #{tpu_custom_call.1}
  #allocation0 [shape = 'u32[]', space=smem, size = 0x4, offset = 0x4, fixed_abs, tag = 'smem constant byte address 0x4 - core index']
  #allocation1 [shape = 'u32[144,128]{1,0:T(1,128)}', space=vmem, size = 0x12000, scoped, tag = 'internal scratch']
  #allocation2 [shape = 'f32[4,512]{1,0:T(4,128)}', space=vmem, size = 0x2000, scoped, tag = 'scratch operand']
  #allocation3 [shape = 'f32[1]{0:T(128)}', space=smem, size = 0x200, scoped, tag = 'scratch operand']
  %s0 = inlined_call_operand.vmem [shape: f32[2,4], index: 0, kind: input, shape index: {}]
  %s1 = inlined_call_operand.vmem [shape: s32[2,1], index: 1, kind: input, shape index: {}]
  %s2 = inlined_call_operand.hbm [shape: f32[4,512], index: 2, kind: input, shape index: {}]
  %s3 = inlined_call_operand.hbm [shape: f32[4,512], index: 3, kind: input, shape index: {}]
  %s4 = inlined_call_operand.hbm [shape: f32[1,8,128], index: 4, kind: output, shape index: {}]
  %s5 = sld [smem:[#allocation0]]
  $region46: #{tpu_custom_call.1} parent=0
    _
  %s7 = ssub.s32 1, %s5
  %s8 = scalar_select 0, %s7, %s5
  $region1: #{tpu_custom_call.1} parent=0
    #allocation4 [shape = 'u8[8192]{0}', space=vmem, size = 0x2000, scoped, tag = 'input window, operand 2, single buffered']
    #allocation5 [shape = 's32[1]{0}', space=sflag, size = 0x4, scoped, tag = 'scoped memory for tpu_custom_call.1']
    #allocation6 [shape = 's32[1]{0}', space=sflag, size = 0x4, scoped, tag = 'scoped memory for tpu_custom_call.1']
    #allocation7 [shape = 'u8[8192]{0}', space=vmem, size = 0x2000, scoped, tag = 'input window, operand 3, single buffered']
    #allocation8 [shape = 's32[1]{0}', space=sflag, size = 0x4, scoped, tag = 'scoped memory for tpu_custom_call.1']
    #allocation9 [shape = 'u8[4096]{0}', space=vmem, size = 0x1000, scoped, tag = 'output window, operand 0, single buffered']
    %9 = vsyncpa [#allocation5], 0
    %10 = vsyncpa [#allocation8], 0
    %11 = vsyncpa [#allocation6], 0
    // Predicated region
    $region2: #{tpu_custom_call.1} parent=1 // pred_check
      _
    $region3: #{tpu_custom_call.1} parent=1 // pred_check_branch
      %13 = sbr.rel (0) target = $region5
    $region4: #{tpu_custom_call.1} parent=1 // pred_region
      _
    $region5: #{tpu_custom_call.1} parent=1 // pred_fallthru
      _
    // Predicated region
    $region6: #{tpu_custom_call.1} parent=1 // pred_check
      _
    $region7: #{tpu_custom_call.1} parent=1 // pred_check_branch
      %15 = sbr.rel (0) target = $region9
    $region8: #{tpu_custom_call.1} parent=1 // pred_region
      _
    $region9: #{tpu_custom_call.1} parent=1 // pred_fallthru
      _
    // Predicated region
    $region10: #{tpu_custom_call.1} parent=1 // pred_check
      _
    $region11: #{tpu_custom_call.1} parent=1 // pred_check_branch
      %17 = sbr.rel (0) target = $region13
    $region12: #{tpu_custom_call.1} parent=1 // pred_region
      %s18 = sadd.s32 0, 0
      %p19 = scmp.lt.s32.totalorder %s18, 0
      %s20 = scalar_select %p19, %s18, 0
      %s22 = ssub.s32 256, 256
      %23 = vsyncadd [#allocation5], %s22
      %s24 = smul.addr %s20, 4
      %s25 = smul.addr %s24, 64
      %s26 = scalar_lea.hbm %s2, %s25
      %s28 = sshll.u32 [#allocation4], 4
      %s29 = int_to_ptr.vmem [resolvable:$true] %s28
      %31 = dma.hbm_to_vmem [thread:$0]  %s26, 256, %s29, [#allocation5]
    $region13: #{tpu_custom_call.1} parent=1 // pred_fallthru
      _
    // Predicated region
    $region14: #{tpu_custom_call.1} parent=1 // pred_check
      _
    $region15: #{tpu_custom_call.1} parent=1 // pred_check_branch
      %33 = sbr.rel (0) target = $region17
    $region16: #{tpu_custom_call.1} parent=1 // pred_region
      %s34 = sadd.s32 0, 0
      %p35 = scmp.lt.s32.totalorder %s34, 0
      %s36 = scalar_select %p35, %s34, 0
      %s38 = ssub.s32 256, 256
      %39 = vsyncadd [#allocation8], %s38
      %s40 = smul.addr %s36, 4
      %s41 = smul.addr %s40, 64
      %s42 = scalar_lea.hbm %s3, %s41
      %s44 = sshll.u32 [#allocation7], 4
      %s45 = int_to_ptr.vmem [resolvable:$true] %s44
      %47 = dma.hbm_to_vmem [thread:$0]  %s42, 256, %s45, [#allocation8]
    $region17: #{tpu_custom_call.1} parent=1 // pred_fallthru
      _
    // Predicated region
    $region18: #{tpu_custom_call.1} parent=1 // pred_check
      _
    $region19: #{tpu_custom_call.1} parent=1 // pred_check_branch
      %49 = sbr.rel (0) target = $region21
    $region20: #{tpu_custom_call.1} parent=1 // pred_region
      %50 = dma.done [#allocation5], 256
    $region21: #{tpu_custom_call.1} parent=1 // pred_fallthru
      _
    // Predicated region
    $region22: #{tpu_custom_call.1} parent=1 // pred_check
      _
    $region23: #{tpu_custom_call.1} parent=1 // pred_check_branch
      %52 = sbr.rel (0) target = $region25
    $region24: #{tpu_custom_call.1} parent=1 // pred_region
      %53 = dma.done [#allocation8], 256
    $region25: #{tpu_custom_call.1} parent=1 // pred_fallthru
      _
    %s54 = sadd.s32 0, 0
    %p55 = scmp.lt.s32.totalorder %s54, 0
    %s56 = scalar_select %p55, %s54, 0
    %s57 = sadd.s32 0, 0
    %p58 = scmp.lt.s32.totalorder %s57, 0
    %s59 = scalar_select %p58, %s57, 0
    %p60 = scmp.eq.s32.totalorder 0, 0
    // Predicated region
    $region26: #{tpu_custom_call.1} parent=1 // pred_check
      %p61 = pneg %p60
    $region27: #{tpu_custom_call.1} parent=1 // pred_check_branch
      %63 = sbr.rel (%p61) target = $region29
    $region28: #{tpu_custom_call.1} parent=1 // pred_region
      %64 = vst [vmem:[#allocation2] sm:$0xff] 0.0
      %65 = vst [vmem:[#allocation2 + $0x8] sm:$0xff] 0.0
      %s66 = scalar_lea.smem [#allocation3], 0
      %67 = sst [smem:[%s66]] 0.0
    $region29: #{tpu_custom_call.1} parent=1 // pred_fallthru
      _
    %p68 = scmp.eq.s32.totalorder 0, 0
    %p69 = pnand %p68, %p60
    %p70 = pneg %p69
    // Predicated region
    $region30: #{tpu_custom_call.1} parent=1 // pred_check
      _
    $region31: #{tpu_custom_call.1} parent=1 // pred_check_branch
      %72 = sbr.rel (%p69) target = $region33
    $region32: #{tpu_custom_call.1} parent=1 // pred_region
      %v73 = vld [vmem:[%s0] sm:$0x3]
      %vm74 = vcmask 25600
      %v75 = vsel %vm74, %v73, -inf
      %76 = vmax.xlane.f32.xlu0 %v75
      %v77 = vpop.xlane.xlu0 %76
      %v78 = vsub.f32 %v73, %v77
      %v79 = vmul.f32 %v78, 1.442695
      %v80 = vpow.pop %v79
      %v81 = vsel %vm74, %v80, 0.0
      %82 = vadd.xlane.f32.xlu0 %v81
      %v83 = vpop.xlane.xlu0 %82
      %v84 = vlog2.pop %v83
      %v85 = vmul.f32 %v84, 0.6931472
      %v86 = vadd.f32 %v85, %v77
      %v87 = vld [vmem:[%s1] sm:$0x3]
      %v88 = vlaneseq
      %v89 = vand.u32 %v88, 127
      %90 = vset.pattern.permute.xlu0 0
      %91 = vperm.xlu0 %90, %v87
      %v92 = vpop.permute.xlu0 %91
      %vm93 = vcmp.eq.s32.totalorder %v89, %v92
      %v94 = vsel %vm93, %v73, 0.0
      %v95 = vsel %vm74, %v94, 0.0
      %96 = vadd.xlane.f32.xlu0 %v95
      %v97 = vpop.xlane.xlu0 %96
      %v98 = vsub.f32 %v86, %v97
      %vm99 = vcmask 1024
      %v100 = vsel %vm99, %v98, 0.0
      %101 = vadd.xlane.f32.xlu0 %v100
      %v102 = vpop.xlane.xlu0 %101
      %v103 = vrot.slane %v102, 4
      %v104 = vadd.f32 %v102, %v103
      %v105 = vrot.slane %v104, 2
      %v106 = vadd.f32 %v104, %v105
      %v107 = vrot.slane %v106, 1
      %v108 = vadd.f32 %v106, %v107
      %s109 = vtos %v108
      %v110 = vrcp.pop 2.0
      %s111 = vtos %v110
      %s112 = smul.f32 %s109, %s111
      %s113 = scalar_lea.smem [#allocation3], 0
      %114 = sst [smem:[%s113]] %s112
    $region33: #{tpu_custom_call.1} parent=1 // pred_fallthru
      _
    %v115 = vld [vmem:[#allocation4] sm:$0xff]
    %v116 = vld [vmem:[#allocation4 + $0x8] sm:$0xff]
    %v117 = vld [vmem:[#allocation7] sm:$0xff]
    %v118 = vld [vmem:[#allocation7 + $0x8] sm:$0xff]
    %v119 = vsub.f32 %v115, %v117
    %v120 = vsub.f32 %v116, %v118
    %v121 = vmul.f32 %v119, %v119
    %v122 = vmul.f32 %v120, %v120
    %v123 = vld [vmem:[#allocation2] sm:$0xff]
    %v124 = vld [vmem:[#allocation2 + $0x8] sm:$0xff]
    %v125 = vadd.f32 %v123, %v121
    %v126 = vadd.f32 %v124, %v122
    %127 = vst [vmem:[#allocation2] sm:$0xff] %v125
    %128 = vst [vmem:[#allocation2 + $0x8] sm:$0xff] %v126
    // Predicated region
    $region34: #{tpu_custom_call.1} parent=1 // pred_check
      %p129 = pneg %p60
    $region35: #{tpu_custom_call.1} parent=1 // pred_check_branch
      %131 = sbr.rel (%p129) target = $region37
    $region36: #{tpu_custom_call.1} parent=1 // pred_region
      %v132 = vld [vmem:[#allocation2] sm:$0xff]
      %v133 = vld [vmem:[#allocation2 + $0x8] sm:$0xff]
      %v136 = vcombine.high %v132, %v132
      %v137 = vcombine.high %v133, %v133
      %vm140 = vcmask 1043456
      %v141 = vsel %vm140, %v132, 0.0
      %v142 = vsel %vm140, %v136, 0.0
      %v143 = vadd.f32 %v141, %v142
      %v144 = vsel %vm140, %v133, 0.0
      %v145 = vadd.f32 %v143, %v144
      %v146 = vsel %vm140, %v137, 0.0
      %v147 = vadd.f32 %v145, %v146
      %148 = vadd.xlane.f32.xlu0 %v147
      %v149 = vpop.xlane.xlu0 %148
      %v150 = vrot.slane %v149, 4
      %v151 = vadd.f32 %v149, %v150
      %v152 = vrot.slane %v151, 2
      %v153 = vadd.f32 %v151, %v152
      %v154 = vrot.slane %v153, 1
      %v155 = vadd.f32 %v153, %v154
      %s156 = vtos %v155
      %v157 = vlaneseq
      %v158 = vshrl.u32 %v157, 7
      %v159 = vlaneseq
      %v160 = vand.u32 %v159, 127
      %vm161 = vcmp.eq.s32.totalorder %v158, 0
      %vm162 = vcmp.eq.s32.totalorder %v160, 0
      %vm163 = vmand %vm161, %vm162
      %s164 = sld [smem:[#allocation3]]
      %v165 = vstv %s164
      %v166 = vsel %vm163, %v165, 0.0
      %vm167 = vcmp.eq.s32.totalorder %v160, 1
      %vm168 = vmand %vm161, %vm167
      %v169 = vstv %s156
      %v170 = vsel %vm168, %v169, 0.0
      %v171 = vadd.f32 %v166, %v170
      %172 = vst [vmem:[#allocation9] sm:$0xff] %v171
    $region37: #{tpu_custom_call.1} parent=1 // pred_fallthru
      _
    // Predicated region
    $region38: #{tpu_custom_call.1} parent=1 // pred_check
      _
    $region39: #{tpu_custom_call.1} parent=1 // pred_check_branch
      %174 = sbr.rel (0) target = $region41
    $region40: #{tpu_custom_call.1} parent=1 // pred_region
      %s176 = ssub.s32 128, 128
      %177 = vsyncadd [#allocation6], %s176
      %s179 = sshll.u32 [#allocation9], 4
      %s180 = int_to_ptr.vmem [resolvable:$true] %s179
      %182 = dma.vmem_to_hbm [thread:$0]  %s180, 128, %s4, [#allocation6]
    $region41: #{tpu_custom_call.1} parent=1 // pred_fallthru
      _
    // Predicated region
    $region42: #{tpu_custom_call.1} parent=1 // pred_check
      _
    $region43: #{tpu_custom_call.1} parent=1 // pred_check_branch
      %184 = sbr.rel (0) target = $region45
    $region44: #{tpu_custom_call.1} parent=1 // pred_region
      %185 = dma.done [#allocation6], 128
    $region45: #{tpu_custom_call.1} parent=1 // pred_fallthru
      _
    %186 = vsyncpa [#allocation5], 1
    %187 = vsyncpa [#allocation8], 1
    %188 = vsyncpa [#allocation6], 1

</llo_original>
